<compile_context>
chip_gen: v6e
topology: v6e:2x2x1
jax: 0.10.0
libtpu: 0.0.40
codegen_flags: <defaults>
</compile_context>

<pallas_src>
import functools

import jax
import jax.numpy as jnp
from jax.experimental import pallas as pl
from jax.experimental.pallas import tpu as pltpu


def _round_up(n, m):
    return ((n + m - 1) // m) * m


# --------------------------------------------------------------------------------------
# Kernels
# --------------------------------------------------------------------------------------
def _linear_mask_kernel_single_k(x_ref, w_ref, b_ref, au_ref, o_ref,
                                 *, masking, mask_value):
    # Single K step: matmul + bias + mask fused, no accumulator scratch.
    out = jnp.dot(x_ref[...], w_ref[...], preferred_element_type=jnp.float32)
    out = out + b_ref[...]
    if masking:
        out = jnp.where(au_ref[...] == 0, jnp.float32(mask_value), out)
    o_ref[...] = out.astype(o_ref.dtype)


def _linear_mask_kernel_multi_k(x_ref, w_ref, b_ref, au_ref, o_ref, acc_ref,
                                *, masking, mask_value):
    # x_ref: (TM, TK), w_ref: (TK, TN) [K-major weight, no relayout], acc_ref f32 (TM, TN)
    k = pl.program_id(2)

    @pl.when(k == 0)
    def _():
        acc_ref[...] = jnp.zeros_like(acc_ref)

    acc_ref[...] += jnp.dot(x_ref[...], w_ref[...],
                            preferred_element_type=jnp.float32)

    @pl.when(k == pl.num_programs(2) - 1)
    def _():
        out = acc_ref[...] + b_ref[...]
        if masking:
            out = jnp.where(au_ref[...] == 0, jnp.float32(mask_value), out)
        o_ref[...] = out.astype(o_ref.dtype)


# --------------------------------------------------------------------------------------
# One-time parameter preparation (cache the result; it only changes on increment()).
# --------------------------------------------------------------------------------------
def prepare_classifier_params(weight, bias, active_units, *,
                              compute_dtype=jnp.bfloat16, tk_max=2048):
    """weight: [out_features, in_features] (PyTorch layout); bias: [out_features];
    active_units: [out_features] int8/int32.  Returns padded, K-major device params."""
    C, F = weight.shape
    tk_max = max(128, _round_up(tk_max, 128))
    Cp = _round_up(C, 128)                      # lane-dense output columns
    Fp = _round_up(F, 128)
    if Fp > tk_max:                             # make padded K a multiple of the K tile
        Fp = _round_up(F, tk_max)

    # K-major weight [Fp, Cp]: MXU-friendly stationary layout, transposed once here.
    w_t = jnp.zeros((Fp, Cp), compute_dtype).at[:F, :C].set(
        weight.astype(compute_dtype).T)
    b_p = jnp.zeros((1, Cp), jnp.float32).at[0, :C].set(bias.astype(jnp.float32))
    # `!= 0` first so tiny nonzero float active_units never silently unmask.
    au_p = jnp.zeros((1, Cp), jnp.int32).at[0, :C].set(
        (active_units != 0).astype(jnp.int32))
    return {"w_t": w_t, "b": b_p, "au": au_p,
            "out_features": C, "in_features": F}


# --------------------------------------------------------------------------------------
# Forward
# --------------------------------------------------------------------------------------
def incremental_classifier_forward(x, params, *, masking=True, training=True,
                                   mask_value=-1000.0,
                                   tm=256, tn=256, tk_max=2048,
                                   out_dtype=jnp.float32,
                                   vmem_limit_bytes=None):
    """x: [B, in_features].  `params` comes from prepare_classifier_params()."""
    B, F = x.shape
    C = params["out_features"]
    assert F == params["in_features"], (F, params["in_features"])
    w_t, bias_p, au_p = params["w_t"], params["b"], params["au"]
    Fp, Cp = w_t.shape
    compute_dtype = w_t.dtype

    tm = max(8, _round_up(tm, 8))
    tn = max(128, _round_up(tn, 128))
    tk_max = max(128, _round_up(tk_max, 128))

    # ---- Tile / grid selection ---------------------------------------------------
    # K: largest 128-multiple tile <= tk_max that divides padded F (single step if it fits).
    TK = min(tk_max, Fp)
    while Fp % TK != 0:
        TK -= 128
    kb = Fp // TK

    # M: single block for small batches (no M padding); otherwise tiles of `tm`.
    if B <= tm:
        TM, Bp = B, B
    else:
        TM = tm
        Bp = _round_up(B, TM)
    mb = Bp // TM

    # N: lane-dense 128-multiple tiles that divide Cp.
    TN = min(tn, Cp)
    while Cp % TN != 0:
        TN -= 128
    nb = Cp // TN
    # v7x megacore: guarantee >= 2 blocks on a "parallel" axis when M collapses to one.
    if mb == 1 and nb < 2 and Cp >= 256:
        half = Cp // 2
        TN = half if (half % 128 == 0 and Cp % half == 0) else 128
        nb = Cp // TN

    # ---- Input prep (only x; weight/bias/mask were prepared once and cached) ------
    x = x.astype(compute_dtype)
    if Bp != B or Fp != F:
        # Zero K-padding contributes nothing to the dot; padded rows are sliced off.
        x = jnp.pad(x, ((0, Bp - B), (0, Fp - F)))

    apply_mask = bool(masking and training)     # per the spec's `self.training` gate
    in_item = jnp.dtype(compute_dtype).itemsize
    out_item = jnp.dtype(out_dtype).itemsize

    if vmem_limit_bytes is None:
        need = (2 * (TM * TK + TK * TN) * in_item      # double-buffered x / weight tiles
                + 2 * 2 * TN * 8                       # bias + active_units tiles
                + 2 * TM * TN * out_item               # double-buffered output tiles
                + (TM * TN * 4 if kb > 1 else 0))      # f32 accumulator scratch
        # Default tiles need only a few MiB; cap at 64 MiB so v7x never overshoots.
        vmem_limit_bytes = min(64 * 1024 * 1024, max(32 * 1024 * 1024, 2 * need))

    cost = pl.CostEstimate(
        flops=2 * B * C * F,
        transcendentals=0,
        bytes_accessed=(Bp * Fp * in_item + Fp * Cp * in_item
                        + Cp * 8 + Bp * Cp * out_item))

    if kb == 1:
        # Fused fast path: no accumulator scratch, no K grid axis.
        kernel = functools.partial(_linear_mask_kernel_single_k,
                                   masking=apply_mask, mask_value=float(mask_value))
        grid = (mb, nb)
        in_specs = [
            pl.BlockSpec((TM, TK), lambda i, j: (i, 0)),   # x
            pl.BlockSpec((TK, TN), lambda i, j: (0, j)),   # weight [K, N]
            pl.BlockSpec((1, TN), lambda i, j: (0, j)),    # bias
            pl.BlockSpec((1, TN), lambda i, j: (0, j)),    # active_units
        ]
        out_specs = pl.BlockSpec((TM, TN), lambda i, j: (i, j))
        scratch = []
        dims = ("parallel", "parallel")
    else:
        kernel = functools.partial(_linear_mask_kernel_multi_k,
                                   masking=apply_mask, mask_value=float(mask_value))
        grid = (mb, nb, kb)
        in_specs = [
            pl.BlockSpec((TM, TK), lambda i, j, k: (i, k)),   # x
            pl.BlockSpec((TK, TN), lambda i, j, k: (k, j)),   # weight [K, N]
            pl.BlockSpec((1, TN), lambda i, j, k: (0, j)),    # bias
            pl.BlockSpec((1, TN), lambda i, j, k: (0, j)),    # active_units
        ]
        out_specs = pl.BlockSpec((TM, TN), lambda i, j, k: (i, j))
        scratch = [pltpu.VMEM((TM, TN), jnp.float32)]
        dims = ("parallel", "parallel", "arbitrary")

    out = pl.pallas_call(
        kernel,
        out_shape=jax.ShapeDtypeStruct((Bp, Cp), out_dtype),
        grid_spec=pltpu.PrefetchScalarGridSpec(
            num_scalar_prefetch=0,
            grid=grid,
            in_specs=in_specs,
            out_specs=out_specs,
            scratch_shapes=scratch,
        ),
        compiler_params=pltpu.CompilerParams(
            dimension_semantics=dims,
            vmem_limit_bytes=int(vmem_limit_bytes)),
        cost_estimate=cost,
    )(x, w_t, bias_p, au_p)

    if Bp != B or Cp != C:
        out = out[:B, :C]
    return out


# --------------------------------------------------------------------------------------
# Reference (same math in plain JAX, with the same compute-dtype rounding).
# --------------------------------------------------------------------------------------
def _reference(x, weight, bias, active_units, *, masking, training, mask_value,
               compute_dtype=jnp.bfloat16):
    # NOTE: operands are rounded to bf16 exactly like the kernel; PyTorch's nn.Linear
    # computes in f32.  Pass compute_dtype=jnp.float32 to both paths for bit-closeness.
    xr = x.astype(compute_dtype).astype(jnp.float32)
    wr = weight.astype(compute_dtype).astype(jnp.float32)
    out = xr @ wr.T + bias.astype(jnp.float32)
    if masking and training:
        out = jnp.where(active_units[None, :] == 0, jnp.float32(mask_value), out)
    return out


if __name__ == "__main__":
    key = jax.random.PRNGKey(0)

    # ---- Case 1: module defaults (in_features=32, initial_out_features=2), batch=4 ----
    in_features, out_features, batch = 32, 2, 4
    kx, kw, kb_ = jax.random.split(key, 3)
    bound = 1.0 / (in_features ** 0.5)
    x = jax.random.normal(kx, (batch, in_features), dtype=jnp.float32)
    weight = jax.random.uniform(kw, (out_features, in_features),
                                minval=-bound, maxval=bound, dtype=jnp.float32)
    bias = jax.random.uniform(kb_, (out_features,),
                              minval=-bound, maxval=bound, dtype=jnp.float32)
    # active_units starts as zeros (per __init__); simulate increment([0]) -> unit 0 active.
    active_units = jnp.zeros((out_features,), dtype=jnp.int8).at[0].set(1)

    params = prepare_classifier_params(weight, bias, active_units)   # cached across calls
    out = incremental_classifier_forward(x, params, masking=True, training=True,
                                         mask_value=-1000.0)
    out = jax.block_until_ready(out)
    ref = _reference(x, weight, bias, active_units,
                     masking=True, training=True, mask_value=-1000.0)
    assert out.shape == (batch, out_features)
    assert jnp.allclose(out, ref, atol=2e-3, rtol=2e-3), (out, ref)

    # ---- Case 2: multi-N-block grid (single fused K step; exercises the v7x N split) ----
    in_features, out_features, batch = 384, 130, 20
    k2 = jax.random.PRNGKey(1)
    kx, kw, kb_ = jax.random.split(k2, 3)
    bound = 1.0 / (in_features ** 0.5)
    x2 = jax.random.normal(kx, (batch, in_features), dtype=jnp.float32)
    w2 = jax.random.uniform(kw, (out_features, in_features),
                            minval=-bound, maxval=bound, dtype=jnp.float32)
    b2 = jax.random.uniform(kb_, (out_features,),
                            minval=-bound, maxval=bound, dtype=jnp.float32)
    au2 = jnp.zeros((out_features,), dtype=jnp.int8).at[jnp.arange(0, 64)].set(1)

    params2 = prepare_classifier_params(w2, b2, au2)
    out2 = incremental_classifier_forward(x2, params2, masking=True, training=True,
                                          mask_value=-1000.0)
    out2 = jax.block_until_ready(out2)
    ref2 = _reference(x2, w2, b2, au2, masking=True, training=True, mask_value=-1000.0)
    assert out2.shape == (batch, out_features)
    assert jnp.allclose(out2, ref2, atol=2e-3, rtol=2e-3), (out2, ref2)

    # ---- Case 3: force multiple K steps -> multi-K accumulator kernel path ----
    out3 = incremental_classifier_forward(x2, params2, masking=True, training=True,
                                          mask_value=-1000.0, tk_max=128)
    out3 = jax.block_until_ready(out3)
    assert jnp.allclose(out3, ref2, atol=2e-3, rtol=2e-3), (out3, ref2)

    # ---- Case 4: eval path (mask not applied when training=False, per the spec) ----
    out4 = incremental_classifier_forward(x, params, masking=True, training=False)
    out4 = jax.block_until_ready(out4)
    ref4 = _reference(x, weight, bias, active_units,
                      masking=True, training=False, mask_value=-1000.0)
    assert jnp.allclose(out4, ref4, atol=2e-3, rtol=2e-3), (out4, ref4)

    print("KERNEL_OK")
</pallas_src>

<mosaic_0001>
module attributes {stable_mosaic.version = 11 : i64} {
  func.func @_linear_mask_kernel_single_k(%arg0: i32, %arg1: i32, %arg2: memref<4x128xbf16, #tpu.memory_space<vmem>>, %arg3: memref<128x128xbf16, #tpu.memory_space<vmem>>, %arg4: memref<1x128xf32, #tpu.memory_space<vmem>>, %arg5: memref<1x128xi32, #tpu.memory_space<vmem>>, %arg6: memref<4x128xf32, #tpu.memory_space<vmem>>) attributes {dimension_semantics = [#tpu.dimension_semantics<parallel>, #tpu.dimension_semantics<parallel>], iteration_bounds = array<i64: 1, 1>, scalar_prefetch = 0 : i64, scratch_operands = 0 : i64, tpu.core_type = #tpu.core_type<tc>, window_params = [{transform_indices = @transform_0, window_bounds = array<i64: 4, 128>}, {transform_indices = @transform_1, window_bounds = array<i64: 128, 128>}, {transform_indices = @transform_2, window_bounds = array<i64: 1, 128>}, {transform_indices = @transform_3, window_bounds = array<i64: 1, 128>}, {transform_indices = @transform_4, window_bounds = array<i64: 4, 128>}]} {
    %c0 = arith.constant 0 : index
    %c0_0 = arith.constant 0 : index
    %0 = vector.load %arg2[%c0, %c0_0] : memref<4x128xbf16, #tpu.memory_space<vmem>>, vector<4x128xbf16>
    %c0_1 = arith.constant 0 : index
    %c0_2 = arith.constant 0 : index
    %1 = vector.load %arg3[%c0_1, %c0_2] : memref<128x128xbf16, #tpu.memory_space<vmem>>, vector<128x128xbf16>
    %cst = arith.constant dense<0.000000e+00> : vector<4x128xf32>
    %2 = tpu.matmul %0, %1, %cst {dimension_numbers = #tpu.dot_dimension_numbers<[1], [0], [0], [1], [0, 0, 1, 1], [], []>} : vector<4x128xbf16>, vector<128x128xbf16>, vector<4x128xf32> -> vector<4x128xf32>
    %c0_3 = arith.constant 0 : index
    %c0_4 = arith.constant 0 : index
    %3 = vector.load %arg4[%c0_3, %c0_4] : memref<1x128xf32, #tpu.memory_space<vmem>>, vector<1x128xf32>
    %4 = vector.broadcast %3 : vector<1x128xf32> to vector<4x128xf32>
    %5 = arith.addf %2, %4 : vector<4x128xf32>
    %c0_5 = arith.constant 0 : index
    %c0_6 = arith.constant 0 : index
    %6 = vector.load %arg5[%c0_5, %c0_6] : memref<1x128xi32, #tpu.memory_space<vmem>>, vector<1x128xi32>
    %c0_i32 = arith.constant 0 : i32
    %7 = vector.broadcast %c0_i32 : i32 to vector<1x128xi32>
    %8 = arith.cmpi eq, %6, %7 : vector<1x128xi32>
    %cst_7 = arith.constant -1.000000e+03 : f32
    %9 = vector.shape_cast %8 : vector<1x128xi1> to vector<1x128xi1>
    %10 = vector.broadcast %9 : vector<1x128xi1> to vector<4x128xi1>
    %11 = vector.broadcast %cst_7 : f32 to vector<4x128xf32>
    %12 = arith.select %10, %11, %5 : vector<4x128xi1>, vector<4x128xf32>
    %c0_8 = arith.constant 0 : index
    %c0_9 = arith.constant 0 : index
    %13 = vector.load %arg6[%c0_8, %c0_9] : memref<4x128xf32, #tpu.memory_space<vmem>>, vector<4x128xf32>
    tpu.vector_store %arg6[%c0_8, %c0_9], %12 {strides = array<i32>} : memref<4x128xf32, #tpu.memory_space<vmem>>, vector<4x128xf32>,
    return
  }
  func.func @transform_0(%arg0: i32, %arg1: i32) -> (i32, i32) {
    %c0_i32 = arith.constant 0 : i32
    %c0_i32_0 = arith.constant 0 : i32
    return %arg0, %c0_i32 : i32, i32
  }
  func.func @transform_1(%arg0: i32, %arg1: i32) -> (i32, i32) {
    %c0_i32 = arith.constant 0 : i32
    %c0_i32_0 = arith.constant 0 : i32
    return %c0_i32, %arg1 : i32, i32
  }
  func.func @transform_2(%arg0: i32, %arg1: i32) -> (i32, i32) {
    %c0_i32 = arith.constant 0 : i32
    %c0_i32_0 = arith.constant 0 : i32
    return %c0_i32, %arg1 : i32, i32
  }
  func.func @transform_3(%arg0: i32, %arg1: i32) -> (i32, i32) {
    %c0_i32 = arith.constant 0 : i32
    %c0_i32_0 = arith.constant 0 : i32
    return %c0_i32, %arg1 : i32, i32
  }
  func.func @transform_4(%arg0: i32, %arg1: i32) -> (i32, i32) {
    %c0_i32 = arith.constant 0 : i32
    return %arg0, %arg1 : i32, i32
  }
}

</mosaic_0001>

<llo_original>
// kernel: tpu_custom_call.1
$region0: #{tpu_custom_call.1}
  #allocation0 [shape = 'u32[]', space=smem, size = 0x4, offset = 0x4, fixed_abs, tag = 'smem constant byte address 0x4 - core index']
  #allocation1 [shape = 'u32[144,128]{1,0:T(1,128)}', space=vmem, size = 0x12000, scoped, tag = 'internal scratch']
  %s0 = inlined_call_operand.hbm [shape: bf16[4,128], index: 0, kind: input, shape index: {}]
  %s1 = inlined_call_operand.hbm [shape: bf16[128,128], index: 1, kind: input, shape index: {}]
  %s2 = inlined_call_operand.vmem [shape: f32[1,128], index: 2, kind: input, shape index: {}]
  %s3 = inlined_call_operand.vmem [shape: s32[1,128], index: 3, kind: input, shape index: {}]
  %s4 = inlined_call_operand.hbm [shape: f32[4,128], index: 4, kind: output, shape index: {}]
  %s5 = sld [smem:[#allocation0]]
  $region34: #{tpu_custom_call.1} parent=0
    _
  %s7 = ssub.s32 1, %s5
  %s8 = scalar_select 0, %s7, %s5
  $region1: #{tpu_custom_call.1} parent=0
    #allocation2 [shape = 'u8[1024]{0}', space=vmem, size = 0x400, scoped, tag = 'input window, operand 0, single buffered']
    #allocation3 [shape = 's32[1]{0}', space=sflag, size = 0x4, scoped, tag = 'scoped memory for tpu_custom_call.1']
    #allocation4 [shape = 's32[1]{0}', space=sflag, size = 0x4, scoped, tag = 'scoped memory for tpu_custom_call.1']
    #allocation5 [shape = 'u8[32768]{0}', space=vmem, size = 0x8000, scoped, tag = 'input window, operand 1, single buffered']
    #allocation6 [shape = 's32[1]{0}', space=sflag, size = 0x4, scoped, tag = 'scoped memory for tpu_custom_call.1']
    #allocation7 [shape = 'u8[2048]{0}', space=vmem, size = 0x800, scoped, tag = 'output window, operand 0, single buffered']
    %9 = vsyncpa [#allocation3], 0
    %10 = vsyncpa [#allocation6], 0
    %11 = vsyncpa [#allocation4], 0
    // Predicated region
    $region2: #{tpu_custom_call.1} parent=1 // pred_check
      _
    $region3: #{tpu_custom_call.1} parent=1 // pred_check_branch
      %13 = sbr.rel (0) target = $region5
    $region4: #{tpu_custom_call.1} parent=1 // pred_region
      %s15 = ssub.s32 32, 32
      %16 = vsyncadd [#allocation3], %s15
      %s18 = sshll.u32 [#allocation2], 4
      %s19 = int_to_ptr.vmem [resolvable:$true] %s18
      %21 = dma.hbm_to_vmem [thread:$0]  %s0, 32, %s19, [#allocation3]
    $region5: #{tpu_custom_call.1} parent=1 // pred_fallthru
      _
    // Predicated region
    $region6: #{tpu_custom_call.1} parent=1 // pred_check
      _
    $region7: #{tpu_custom_call.1} parent=1 // pred_check_branch
      %23 = sbr.rel (0) target = $region9
    $region8: #{tpu_custom_call.1} parent=1 // pred_region
      %s25 = ssub.s32 1024, 1024
      %26 = vsyncadd [#allocation6], %s25
      %s27 = sshll.u32 [#allocation5], 4
      %s28 = int_to_ptr.vmem [resolvable:$true] %s27
      %33 = dma.hbm_to_vmem [thread:$0]  %s1, 1024, %s28, [#allocation6], 64, 64, 4
    $region9: #{tpu_custom_call.1} parent=1 // pred_fallthru
      _
    // Predicated region
    $region10: #{tpu_custom_call.1} parent=1 // pred_check
      _
    $region11: #{tpu_custom_call.1} parent=1 // pred_check_branch
      %35 = sbr.rel (0) target = $region13
    $region12: #{tpu_custom_call.1} parent=1 // pred_region
      _
    $region13: #{tpu_custom_call.1} parent=1 // pred_fallthru
      _
    // Predicated region
    $region14: #{tpu_custom_call.1} parent=1 // pred_check
      _
    $region15: #{tpu_custom_call.1} parent=1 // pred_check_branch
      %37 = sbr.rel (0) target = $region17
    $region16: #{tpu_custom_call.1} parent=1 // pred_region
      _
    $region17: #{tpu_custom_call.1} parent=1 // pred_fallthru
      _
    // Predicated region
    $region18: #{tpu_custom_call.1} parent=1 // pred_check
      _
    $region19: #{tpu_custom_call.1} parent=1 // pred_check_branch
      %39 = sbr.rel (0) target = $region21
    $region20: #{tpu_custom_call.1} parent=1 // pred_region
      %40 = dma.done [#allocation3], 32
    $region21: #{tpu_custom_call.1} parent=1 // pred_fallthru
      _
    // Predicated region
    $region22: #{tpu_custom_call.1} parent=1 // pred_check
      _
    $region23: #{tpu_custom_call.1} parent=1 // pred_check_branch
      %42 = sbr.rel (0) target = $region25
    $region24: #{tpu_custom_call.1} parent=1 // pred_region
      %43 = dma.done [#allocation6], 1024
    $region25: #{tpu_custom_call.1} parent=1 // pred_fallthru
      _
    %v45 = vld [vmem:[#allocation2] sm:$0x3]
    %v46 = vld [vmem:[#allocation5] sm:$0xf]
    %v47 = vld [vmem:[#allocation5 + $0x4] sm:$0xf]
    %v48 = vld [vmem:[#allocation5 + $0x8] sm:$0xf]
    %v49 = vld [vmem:[#allocation5 + $0xc] sm:$0xf]
    %v50 = vld [vmem:[#allocation5 + $0x10] sm:$0xf]
    %v51 = vld [vmem:[#allocation5 + $0x14] sm:$0xf]
    %v52 = vld [vmem:[#allocation5 + $0x18] sm:$0xf]
    %v53 = vld [vmem:[#allocation5 + $0x1c] sm:$0xf]
    %v54 = vld [vmem:[#allocation5 + $0x20] sm:$0xf]
    %v55 = vld [vmem:[#allocation5 + $0x24] sm:$0xf]
    %v56 = vld [vmem:[#allocation5 + $0x28] sm:$0xf]
    %v57 = vld [vmem:[#allocation5 + $0x2c] sm:$0xf]
    %v58 = vld [vmem:[#allocation5 + $0x30] sm:$0xf]
    %v59 = vld [vmem:[#allocation5 + $0x34] sm:$0xf]
    %v60 = vld [vmem:[#allocation5 + $0x38] sm:$0xf]
    %v61 = vld [vmem:[#allocation5 + $0x3c] sm:$0xf]
    %v62 = vld [vmem:[%s2] sm:$0x1]
    %v64 = vlaneseq
    %v65 = vshrl.u32 %v64, 7
    %v66 = vsub.s32 0, %v65
    %v67 = vrot.slane %v62, %v66
    %v85 = vunpack.c.l.b16 %v46
    %v86 = vunpack.c.l.b16 %v47
    %v87 = vunpack.c.l.b16 %v48
    %v88 = vunpack.c.l.b16 %v49
    %v89 = vunpack.c.l.b16 %v50
    %v90 = vunpack.c.l.b16 %v51
    %v91 = vunpack.c.l.b16 %v52
    %v92 = vunpack.c.l.b16 %v53
    %v93 = vunpack.c.l.b16 %v54
    %v94 = vunpack.c.l.b16 %v55
    %v95 = vunpack.c.l.b16 %v56
    %v96 = vunpack.c.l.b16 %v57
    %v97 = vunpack.c.l.b16 %v58
    %v98 = vunpack.c.l.b16 %v59
    %v99 = vunpack.c.l.b16 %v60
    %v100 = vunpack.c.l.b16 %v61
    %v101 = vpack.c.b16 %v86, %v85
    %v102 = vpack.c.b16 %v88, %v87
    %v103 = vpack.c.b16 %v90, %v89
    %v104 = vpack.c.b16 %v92, %v91
    %v105 = vpack.c.b16 %v94, %v93
    %v106 = vpack.c.b16 %v96, %v95
    %v107 = vpack.c.b16 %v98, %v97
    %v108 = vpack.c.b16 %v100, %v99
    %117 = vmatprep.subr.bf16.mxu0 0
    %118 = vmatpush1.bf16.msra.mxu0 %v108
    %119 = vmatprep.subr.bf16.mxu0 0
    %120 = vmatpush1.bf16.msra.mxu0 %v107
    %121 = vmatprep.subr.bf16.mxu0 0
    %122 = vmatpush1.bf16.msra.mxu0 %v106
    %123 = vmatprep.subr.bf16.mxu0 0
    %124 = vmatpush1.bf16.msra.mxu0 %v105
    %125 = vmatprep.subr.bf16.mxu0 0
    %126 = vmatpush1.bf16.msra.mxu0 %v104
    %127 = vmatprep.subr.bf16.mxu0 0
    %128 = vmatpush1.bf16.msra.mxu0 %v103
    %129 = vmatprep.subr.bf16.mxu0 0
    %130 = vmatpush1.bf16.msra.mxu0 %v102
    %131 = vmatprep.subr.bf16.mxu0 0
    %132 = vmatpush1.bf16.msra.mxu0 %v101
    %133 = vmatprep.subr.bf16.mxu0 0
    %134 = vmatpush2.bf16.msra.mxu0 0
    %135 = vmatprep.subr.bf16.mxu0 0
    %136 = vmatpush2.bf16.msra.mxu0 0
    %137 = vmatprep.subr.bf16.mxu0 0
    %138 = vmatpush2.bf16.msra.mxu0 0
    %139 = vmatprep.subr.bf16.mxu0 0
    %140 = vmatpush2.bf16.msra.mxu0 0
    %141 = vmatprep.subr.bf16.mxu0 0
    %142 = vmatpush2.bf16.msra.mxu0 0
    %143 = vmatprep.subr.bf16.mxu0 0
    %144 = vmatpush2.bf16.msra.mxu0 0
    %145 = vmatprep.subr.bf16.mxu0 0
    %146 = vmatpush2.bf16.msra.mxu0 0
    %147 = vmatprep.subr.bf16.mxu0 0
    %148 = vmatpush2.bf16.msra.mxu0 0
    %149 = vmatprep.mubr.bf16.mxu0 0
    %150 = vmatmul.mubr.bf16.gmra.mxu0 %v45
    %v151 = vpop.f32.mrf.mxu0
    %v152 = vadd.f32 %v67, %v151
    %v153 = vpop.f32.mrf.mxu0
    %v154 = vpop.f32.mrf.mxu0
    %v155 = vpop.f32.mrf.mxu0
    %156 = vdwg.mxu0
    %v157 = vld [vmem:[%s3] sm:$0x1]
    %vm158 = vcmp.eq.s32.totalorder %v157, 0
    %v159 = vsel %vm158, 1, 0
    %v160 = vlaneseq
    %v161 = vshrl.u32 %v160, 7
    %v162 = vsub.s32 0, %v161
    %v163 = vrot.slane %v159, %v162
    %vm164 = vcmp.eq.s32.totalorder %v163, 1
    %v165 = vsel %vm164, -1000.0, %v152
    %166 = vst [vmem:[#allocation7] sm:$0xf] %v165
    // Predicated region
    $region26: #{tpu_custom_call.1} parent=1 // pred_check
      _
    $region27: #{tpu_custom_call.1} parent=1 // pred_check_branch
      %168 = sbr.rel (0) target = $region29
    $region28: #{tpu_custom_call.1} parent=1 // pred_region
      %s170 = ssub.s32 64, 64
      %171 = vsyncadd [#allocation4], %s170
      %s173 = sshll.u32 [#allocation7], 4
      %s174 = int_to_ptr.vmem [resolvable:$true] %s173
      %176 = dma.vmem_to_hbm [thread:$0]  %s174, 64, %s4, [#allocation4]
    $region29: #{tpu_custom_call.1} parent=1 // pred_fallthru
      _
    // Predicated region
    $region30: #{tpu_custom_call.1} parent=1 // pred_check
      _
    $region31: #{tpu_custom_call.1} parent=1 // pred_check_branch
      %178 = sbr.rel (0) target = $region33
    $region32: #{tpu_custom_call.1} parent=1 // pred_region
      %179 = dma.done [#allocation4], 64
    $region33: #{tpu_custom_call.1} parent=1 // pred_fallthru
      _
    %180 = vsyncpa [#allocation3], 1
    %181 = vsyncpa [#allocation6], 1
    %182 = vsyncpa [#allocation4], 1

</llo_original>
